<compile_context>
chip_gen: v5e
topology: v5e:2x2
jax: 0.10.0
libtpu: 0.0.40
codegen_flags: <defaults>
</compile_context>

<pallas_src>
import functools

import jax
import jax.numpy as jnp
from jax.experimental import pallas as pl
from jax.experimental.pallas import tpu as pltpu

_LANE = 128      # last-dim padding target (unmasked vector stores)
_SUBLANE = 8     # second-to-last-dim padding target


# ----------------------------------------------------------------------------
# Fused Pallas kernel:
#   embedding -> conv1+relu -> conv2+relu -> mean-pool -> fc1+relu -> fc2 (-> softmax)
# ----------------------------------------------------------------------------
def _fused_rgcn_kernel(x_ref, a_ref, pool_ref,
                       emb_w_ref, emb_b_ref,
                       c1_wrel_ref, c1_wroot_ref, c1_b_ref,
                       c2_wrel_ref, c2_wroot_ref, c2_b_ref,
                       fc1_w_ref, fc1_b_ref,
                       fc2_w_ref, fc2_b_ref,
                       o_ref, *, num_relations, head):
    f32 = jnp.float32
    n = x_ref.shape[0]

    # node embedding
    h = (jnp.dot(x_ref[...], emb_w_ref[...], preferred_element_type=f32)
         + emb_b_ref[...])

    def rel_conv(h, wrel_ref, wroot_ref, b_ref):
        # All relations aggregated with a single matmul:
        #   A_stack [R*N, N] @ h [N, Fin] -> [R*N, Fin]
        agg = jnp.dot(a_ref[...], h, preferred_element_type=f32)
        out = jnp.dot(h, wroot_ref[...], preferred_element_type=f32) + b_ref[...]
        for r in range(num_relations):              # static unroll (R known at trace)
            out = out + jnp.dot(agg[r * n:(r + 1) * n, :], wrel_ref[r],
                                preferred_element_type=f32)
        return jnp.maximum(out, 0.0)                # conv + F.relu

    h = rel_conv(h, c1_wrel_ref, c1_wroot_ref, c1_b_ref)
    h = rel_conv(h, c2_wrel_ref, c2_wroot_ref, c2_b_ref)

    # global mean pool + MLP head, while h is still resident in VMEM
    g = jnp.dot(pool_ref[...], h, preferred_element_type=f32)
    g = jnp.maximum(jnp.dot(g, fc1_w_ref[...], preferred_element_type=f32)
                    + fc1_b_ref[...], 0.0)
    logits = jnp.dot(g, fc2_w_ref[...], preferred_element_type=f32) + fc2_b_ref[...]

    if head:
        # Padded class columns carry a -1e30 bias -> exp underflows to exactly 0,
        # so this equals softmax over the real classes only.
        m = jnp.max(logits, axis=-1, keepdims=True)
        e = jnp.exp(logits - m)
        logits = e / jnp.sum(e, axis=-1, keepdims=True)

    o_ref[...] = logits.astype(o_ref.dtype)


# ----------------------------------------------------------------------------
# Glue (pure JAX, setup only): dense relational adjacency + pooling matrix
# ----------------------------------------------------------------------------
def build_rel_adj(edge_index, edge_type, num_nodes, num_relations):
    src, dst = edge_index[0], edge_index[1]            # message flows src -> dst
    adj = jnp.zeros((num_relations, num_nodes, num_nodes), jnp.float32)
    adj = adj.at[edge_type, dst, src].add(1.0)
    deg = adj.sum(axis=2, keepdims=True)                # incoming degree per relation
    return jnp.where(deg > 0, adj / jnp.maximum(deg, 1.0), 0.0)


def build_pool_matrix(batch, num_graphs, num_nodes):
    onehot = (batch[None, :] == jnp.arange(num_graphs)[:, None]).astype(jnp.float32)
    counts = onehot.sum(axis=1, keepdims=True)
    return onehot / jnp.maximum(counts, 1.0)            # [num_graphs, N]


def _round_up(v, m):
    return ((v + m - 1) // m) * m


# ----------------------------------------------------------------------------
# Forward pass wrapper (single pallas_call)
# ----------------------------------------------------------------------------
def rgcn_forward(params, x, edge_index, edge_type, batch,
                 num_relations, num_graphs, head=True):
    n = x.shape[0]
    num_classes = params["fc2_b"].shape[0]

    adj = build_rel_adj(edge_index, edge_type, n, num_relations)
    a_stack = adj.reshape(num_relations * n, n)          # [R*N, N]
    pool = build_pool_matrix(batch, num_graphs, n)

    # ---- lane/sublane-dense output padding ---------------------------------
    g_pad = _round_up(max(num_graphs, _SUBLANE), _SUBLANE)
    c_pad = _round_up(max(num_classes, _LANE), _LANE)
    pool_p = jnp.zeros((g_pad, n), jnp.float32).at[:num_graphs, :].set(pool)
    fc2_w_p = jnp.zeros((params["fc2_w"].shape[0], c_pad), jnp.float32)
    fc2_w_p = fc2_w_p.at[:, :num_classes].set(params["fc2_w"])
    fc2_b_p = jnp.full((1, c_pad), -1e30, jnp.float32)
    fc2_b_p = fc2_b_p.at[0, :num_classes].set(params["fc2_b"])

    kernel = functools.partial(_fused_rgcn_kernel,
                               num_relations=num_relations, head=head)
    vmem = pl.BlockSpec(memory_space=pltpu.MemorySpace.VMEM)

    out = pl.pallas_call(
        kernel,
        out_shape=jax.ShapeDtypeStruct((g_pad, c_pad), jnp.float32),
        in_specs=[vmem] * 15,
        out_specs=vmem,
    )(x, a_stack, pool_p,
      params["emb_w"], params["emb_b"].reshape(1, -1),
      params["c1_wrel"], params["c1_wroot"], params["c1_b"].reshape(1, -1),
      params["c2_wrel"], params["c2_wroot"], params["c2_b"].reshape(1, -1),
      params["fc1_w"], params["fc1_b"].reshape(1, -1),
      fc2_w_p, fc2_b_p)

    return out[:num_graphs, :num_classes]


# ----------------------------------------------------------------------------
# Params + pure-JAX reference
# ----------------------------------------------------------------------------
def init_params(key, num_node_types, num_node_features, num_classes, num_relations):
    ks = jax.random.split(key, 10)

    def lin(k, fin, fout):
        s = 1.0 / jnp.sqrt(fin)
        return jax.random.uniform(k, (fin, fout), jnp.float32, -s, s)

    return {
        "emb_w": lin(ks[0], num_node_types, num_node_features),
        "emb_b": jax.random.uniform(ks[1], (num_node_features,), jnp.float32, -0.5, 0.5),
        "c1_wrel": jax.random.uniform(ks[2], (num_relations, num_node_features, 16),
                                      jnp.float32, -0.3, 0.3),
        "c1_wroot": lin(ks[3], num_node_features, 16),
        "c1_b": jnp.zeros((16,), jnp.float32),
        "c2_wrel": jax.random.uniform(ks[4], (num_relations, 16, 32),
                                      jnp.float32, -0.3, 0.3),
        "c2_wroot": lin(ks[5], 16, 32),
        "c2_b": jnp.zeros((32,), jnp.float32),
        "fc1_w": lin(ks[6], 32, 16),
        "fc1_b": jax.random.uniform(ks[7], (16,), jnp.float32, -0.25, 0.25),
        "fc2_w": lin(ks[8], 16, num_classes),
        "fc2_b": jax.random.uniform(ks[9], (num_classes,), jnp.float32, -0.25, 0.25),
    }


def ref_forward(params, x, edge_index, edge_type, batch,
                num_relations, num_graphs, head=True):
    n = x.shape[0]
    adj = build_rel_adj(edge_index, edge_type, n, num_relations)
    pool = build_pool_matrix(batch, num_graphs, n)
    h = x @ params["emb_w"] + params["emb_b"]
    h = jnp.maximum(h @ params["c1_wroot"] + params["c1_b"]
                    + jnp.einsum("rnm,mf,rfg->ng", adj, h, params["c1_wrel"]), 0.0)
    h = jnp.maximum(h @ params["c2_wroot"] + params["c2_b"]
                    + jnp.einsum("rnm,mf,rfg->ng", adj, h, params["c2_wrel"]), 0.0)
    h = pool @ h
    h = jnp.maximum(h @ params["fc1_w"] + params["fc1_b"], 0.0)
    h = h @ params["fc2_w"] + params["fc2_b"]
    return jax.nn.softmax(h, axis=-1) if head else h


if __name__ == "__main__":
    NUM_NODE_TYPES = 4
    NUM_NODE_FEATURES = 8
    NUM_CLASSES = 3
    NUM_RELATIONS = 3
    N_NODES = 16
    N_EDGES = 40
    NUM_GRAPHS = 2

    key = jax.random.PRNGKey(0)
    k_param, k_type, k_src, k_dst, k_rel = jax.random.split(key, 5)

    params = init_params(k_param, NUM_NODE_TYPES, NUM_NODE_FEATURES,
                         NUM_CLASSES, NUM_RELATIONS)

    # data.x: one-hot node-type features [N, num_node_types]
    node_types = jax.random.randint(k_type, (N_NODES,), 0, NUM_NODE_TYPES)
    x = jax.nn.one_hot(node_types, NUM_NODE_TYPES, dtype=jnp.float32)

    # data.edge_index [2, E], data.edge_type [E], data.batch [N]
    src = jax.random.randint(k_src, (N_EDGES,), 0, N_NODES)
    dst = jax.random.randint(k_dst, (N_EDGES,), 0, N_NODES)
    edge_index = jnp.stack([src, dst]).astype(jnp.int32)
    edge_type = jax.random.randint(k_rel, (N_EDGES,), 0, NUM_RELATIONS).astype(jnp.int32)
    batch = jnp.concatenate([jnp.zeros(N_NODES // 2, jnp.int32),
                             jnp.ones(N_NODES - N_NODES // 2, jnp.int32)])

    out = rgcn_forward(params, x, edge_index, edge_type, batch,
                       NUM_RELATIONS, NUM_GRAPHS, head=True)
    out = jax.block_until_ready(out)

    ref = ref_forward(params, x, edge_index, edge_type, batch,
                      NUM_RELATIONS, NUM_GRAPHS, head=True)
    assert out.shape == (NUM_GRAPHS, NUM_CLASSES)
    assert jnp.allclose(out, ref, atol=1e-5), (out, ref)
    assert jnp.allclose(out.sum(axis=-1), 1.0, atol=1e-5)

    print("KERNEL_OK")
</pallas_src>

<mosaic_0001>
module attributes {stable_mosaic.version = 11 : i64} {
  func.func @_fused_rgcn_kernel(%arg0: memref<16x4xf32, #tpu.memory_space<vmem>>, %arg1: memref<48x16xf32, #tpu.memory_space<vmem>>, %arg2: memref<8x16xf32, #tpu.memory_space<vmem>>, %arg3: memref<4x8xf32, #tpu.memory_space<vmem>>, %arg4: memref<1x8xf32, #tpu.memory_space<vmem>>, %arg5: memref<3x8x16xf32, #tpu.memory_space<vmem>>, %arg6: memref<8x16xf32, #tpu.memory_space<vmem>>, %arg7: memref<1x16xf32, #tpu.memory_space<vmem>>, %arg8: memref<3x16x32xf32, #tpu.memory_space<vmem>>, %arg9: memref<16x32xf32, #tpu.memory_space<vmem>>, %arg10: memref<1x32xf32, #tpu.memory_space<vmem>>, %arg11: memref<32x16xf32, #tpu.memory_space<vmem>>, %arg12: memref<1x16xf32, #tpu.memory_space<vmem>>, %arg13: memref<16x128xf32, #tpu.memory_space<vmem>>, %arg14: memref<1x128xf32, #tpu.memory_space<vmem>>, %arg15: memref<8x128xf32, #tpu.memory_space<vmem>>) attributes {dimension_semantics = [], scalar_prefetch = 0 : i64, scratch_operands = 0 : i64, tpu.core_type = #tpu.core_type<tc>} {
    %c0 = arith.constant 0 : index
    %c0_0 = arith.constant 0 : index
    %0 = vector.load %arg0[%c0, %c0_0] : memref<16x4xf32, #tpu.memory_space<vmem>>, vector<16x4xf32>
    %c0_1 = arith.constant 0 : index
    %c0_2 = arith.constant 0 : index
    %1 = vector.load %arg3[%c0_1, %c0_2] : memref<4x8xf32, #tpu.memory_space<vmem>>, vector<4x8xf32>
    %cst = arith.constant dense<0.000000e+00> : vector<16x8xf32>
    %2 = tpu.matmul %0, %1, %cst {dimension_numbers = #tpu.dot_dimension_numbers<[1], [0], [0], [1], [0, 0, 1, 1], [], []>} : vector<16x4xf32>, vector<4x8xf32>, vector<16x8xf32> -> vector<16x8xf32>
    %c0_3 = arith.constant 0 : index
    %c0_4 = arith.constant 0 : index
    %3 = vector.load %arg4[%c0_3, %c0_4] : memref<1x8xf32, #tpu.memory_space<vmem>>, vector<1x8xf32>
    %4 = vector.broadcast %3 : vector<1x8xf32> to vector<16x8xf32>
    %5 = arith.addf %2, %4 : vector<16x8xf32>
    %c0_5 = arith.constant 0 : index
    %c0_6 = arith.constant 0 : index
    %6 = vector.load %arg1[%c0_5, %c0_6] : memref<48x16xf32, #tpu.memory_space<vmem>>, vector<48x16xf32>
    %cst_7 = arith.constant dense<0.000000e+00> : vector<48x8xf32>
    %7 = tpu.matmul %6, %5, %cst_7 {dimension_numbers = #tpu.dot_dimension_numbers<[1], [0], [0], [1], [0, 0, 1, 1], [], []>} : vector<48x16xf32>, vector<16x8xf32>, vector<48x8xf32> -> vector<48x8xf32>
    %c0_8 = arith.constant 0 : index
    %c0_9 = arith.constant 0 : index
    %8 = vector.load %arg6[%c0_8, %c0_9] : memref<8x16xf32, #tpu.memory_space<vmem>>, vector<8x16xf32>
    %cst_10 = arith.constant dense<0.000000e+00> : vector<16x16xf32>
    %9 = tpu.matmul %5, %8, %cst_10 {dimension_numbers = #tpu.dot_dimension_numbers<[1], [0], [0], [1], [0, 0, 1, 1], [], []>} : vector<16x8xf32>, vector<8x16xf32>, vector<16x16xf32> -> vector<16x16xf32>
    %c0_11 = arith.constant 0 : index
    %c0_12 = arith.constant 0 : index
    %10 = vector.load %arg7[%c0_11, %c0_12] : memref<1x16xf32, #tpu.memory_space<vmem>>, vector<1x16xf32>
    %11 = vector.broadcast %10 : vector<1x16xf32> to vector<16x16xf32>
    %12 = arith.addf %9, %11 : vector<16x16xf32>
    %13 = vector.extract_strided_slice %7 {offsets = [0, 0], sizes = [16, 8], strides = [1, 1]} : vector<48x8xf32> to vector<16x8xf32>
    %c0_13 = arith.constant 0 : index
    %c0_14 = arith.constant 0 : index
    %c0_15 = arith.constant 0 : index
    %14 = vector.load %arg5[%c0_13, %c0_14, %c0_15] : memref<3x8x16xf32, #tpu.memory_space<vmem>>, vector<1x8x16xf32>
    %15 = vector.shape_cast %14 : vector<1x8x16xf32> to vector<8x16xf32>
    %cst_16 = arith.constant dense<0.000000e+00> : vector<16x16xf32>
    %16 = tpu.matmul %13, %15, %cst_16 {dimension_numbers = #tpu.dot_dimension_numbers<[1], [0], [0], [1], [0, 0, 1, 1], [], []>} : vector<16x8xf32>, vector<8x16xf32>, vector<16x16xf32> -> vector<16x16xf32>
    %17 = arith.addf %12, %16 : vector<16x16xf32>
    %18 = vector.extract_strided_slice %7 {offsets = [16, 0], sizes = [16, 8], strides = [1, 1]} : vector<48x8xf32> to vector<16x8xf32>
    %c1 = arith.constant 1 : index
    %c0_17 = arith.constant 0 : index
    %c0_18 = arith.constant 0 : index
    %19 = vector.load %arg5[%c1, %c0_17, %c0_18] : memref<3x8x16xf32, #tpu.memory_space<vmem>>, vector<1x8x16xf32>
    %20 = vector.shape_cast %19 : vector<1x8x16xf32> to vector<8x16xf32>
    %cst_19 = arith.constant dense<0.000000e+00> : vector<16x16xf32>
    %21 = tpu.matmul %18, %20, %cst_19 {dimension_numbers = #tpu.dot_dimension_numbers<[1], [0], [0], [1], [0, 0, 1, 1], [], []>} : vector<16x8xf32>, vector<8x16xf32>, vector<16x16xf32> -> vector<16x16xf32>
    %22 = arith.addf %17, %21 : vector<16x16xf32>
    %23 = vector.extract_strided_slice %7 {offsets = [32, 0], sizes = [16, 8], strides = [1, 1]} : vector<48x8xf32> to vector<16x8xf32>
    %c2 = arith.constant 2 : index
    %c0_20 = arith.constant 0 : index
    %c0_21 = arith.constant 0 : index
    %24 = vector.load %arg5[%c2, %c0_20, %c0_21] : memref<3x8x16xf32, #tpu.memory_space<vmem>>, vector<1x8x16xf32>
    %25 = vector.shape_cast %24 : vector<1x8x16xf32> to vector<8x16xf32>
    %cst_22 = arith.constant dense<0.000000e+00> : vector<16x16xf32>
    %26 = tpu.matmul %23, %25, %cst_22 {dimension_numbers = #tpu.dot_dimension_numbers<[1], [0], [0], [1], [0, 0, 1, 1], [], []>} : vector<16x8xf32>, vector<8x16xf32>, vector<16x16xf32> -> vector<16x16xf32>
    %27 = arith.addf %22, %26 : vector<16x16xf32>
    %cst_23 = arith.constant 0.000000e+00 : f32
    %28 = vector.broadcast %cst_23 : f32 to vector<16x16xf32>
    %29 = arith.maximumf %27, %28 : vector<16x16xf32>
    %c0_24 = arith.constant 0 : index
    %c0_25 = arith.constant 0 : index
    %30 = vector.load %arg1[%c0_24, %c0_25] : memref<48x16xf32, #tpu.memory_space<vmem>>, vector<48x16xf32>
    %cst_26 = arith.constant dense<0.000000e+00> : vector<48x16xf32>
    %31 = tpu.matmul %30, %29, %cst_26 {dimension_numbers = #tpu.dot_dimension_numbers<[1], [0], [0], [1], [0, 0, 1, 1], [], []>} : vector<48x16xf32>, vector<16x16xf32>, vector<48x16xf32> -> vector<48x16xf32>
    %c0_27 = arith.constant 0 : index
    %c0_28 = arith.constant 0 : index
    %32 = vector.load %arg9[%c0_27, %c0_28] : memref<16x32xf32, #tpu.memory_space<vmem>>, vector<16x32xf32>
    %cst_29 = arith.constant dense<0.000000e+00> : vector<16x32xf32>
    %33 = tpu.matmul %29, %32, %cst_29 {dimension_numbers = #tpu.dot_dimension_numbers<[1], [0], [0], [1], [0, 0, 1, 1], [], []>} : vector<16x16xf32>, vector<16x32xf32>, vector<16x32xf32> -> vector<16x32xf32>
    %c0_30 = arith.constant 0 : index
    %c0_31 = arith.constant 0 : index
    %34 = vector.load %arg10[%c0_30, %c0_31] : memref<1x32xf32, #tpu.memory_space<vmem>>, vector<1x32xf32>
    %35 = vector.broadcast %34 : vector<1x32xf32> to vector<16x32xf32>
    %36 = arith.addf %33, %35 : vector<16x32xf32>
    %37 = vector.extract_strided_slice %31 {offsets = [0, 0], sizes = [16, 16], strides = [1, 1]} : vector<48x16xf32> to vector<16x16xf32>
    %c0_32 = arith.constant 0 : index
    %c0_33 = arith.constant 0 : index
    %c0_34 = arith.constant 0 : index
    %38 = vector.load %arg8[%c0_32, %c0_33, %c0_34] : memref<3x16x32xf32, #tpu.memory_space<vmem>>, vector<1x16x32xf32>
    %39 = vector.shape_cast %38 : vector<1x16x32xf32> to vector<16x32xf32>
    %cst_35 = arith.constant dense<0.000000e+00> : vector<16x32xf32>
    %40 = tpu.matmul %37, %39, %cst_35 {dimension_numbers = #tpu.dot_dimension_numbers<[1], [0], [0], [1], [0, 0, 1, 1], [], []>} : vector<16x16xf32>, vector<16x32xf32>, vector<16x32xf32> -> vector<16x32xf32>
    %41 = arith.addf %36, %40 : vector<16x32xf32>
    %42 = vector.extract_strided_slice %31 {offsets = [16, 0], sizes = [16, 16], strides = [1, 1]} : vector<48x16xf32> to vector<16x16xf32>
    %c1_36 = arith.constant 1 : index
    %c0_37 = arith.constant 0 : index
    %c0_38 = arith.constant 0 : index
    %43 = vector.load %arg8[%c1_36, %c0_37, %c0_38] : memref<3x16x32xf32, #tpu.memory_space<vmem>>, vector<1x16x32xf32>
    %44 = vector.shape_cast %43 : vector<1x16x32xf32> to vector<16x32xf32>
    %cst_39 = arith.constant dense<0.000000e+00> : vector<16x32xf32>
    %45 = tpu.matmul %42, %44, %cst_39 {dimension_numbers = #tpu.dot_dimension_numbers<[1], [0], [0], [1], [0, 0, 1, 1], [], []>} : vector<16x16xf32>, vector<16x32xf32>, vector<16x32xf32> -> vector<16x32xf32>
    %46 = arith.addf %41, %45 : vector<16x32xf32>
    %47 = vector.extract_strided_slice %31 {offsets = [32, 0], sizes = [16, 16], strides = [1, 1]} : vector<48x16xf32> to vector<16x16xf32>
    %c2_40 = arith.constant 2 : index
    %c0_41 = arith.constant 0 : index
    %c0_42 = arith.constant 0 : index
    %48 = vector.load %arg8[%c2_40, %c0_41, %c0_42] : memref<3x16x32xf32, #tpu.memory_space<vmem>>, vector<1x16x32xf32>
    %49 = vector.shape_cast %48 : vector<1x16x32xf32> to vector<16x32xf32>
    %cst_43 = arith.constant dense<0.000000e+00> : vector<16x32xf32>
    %50 = tpu.matmul %47, %49, %cst_43 {dimension_numbers = #tpu.dot_dimension_numbers<[1], [0], [0], [1], [0, 0, 1, 1], [], []>} : vector<16x16xf32>, vector<16x32xf32>, vector<16x32xf32> -> vector<16x32xf32>
    %51 = arith.addf %46, %50 : vector<16x32xf32>
    %cst_44 = arith.constant 0.000000e+00 : f32
    %52 = vector.broadcast %cst_44 : f32 to vector<16x32xf32>
    %53 = arith.maximumf %51, %52 : vector<16x32xf32>
    %c0_45 = arith.constant 0 : index
    %c0_46 = arith.constant 0 : index
    %54 = vector.load %arg2[%c0_45, %c0_46] : memref<8x16xf32, #tpu.memory_space<vmem>>, vector<8x16xf32>
    %cst_47 = arith.constant dense<0.000000e+00> : vector<8x32xf32>
    %55 = tpu.matmul %54, %53, %cst_47 {dimension_numbers = #tpu.dot_dimension_numbers<[1], [0], [0], [1], [0, 0, 1, 1], [], []>} : vector<8x16xf32>, vector<16x32xf32>, vector<8x32xf32> -> vector<8x32xf32>
    %c0_48 = arith.constant 0 : index
    %c0_49 = arith.constant 0 : index
    %56 = vector.load %arg11[%c0_48, %c0_49] : memref<32x16xf32, #tpu.memory_space<vmem>>, vector<32x16xf32>
    %cst_50 = arith.constant dense<0.000000e+00> : vector<8x16xf32>
    %57 = tpu.matmul %55, %56, %cst_50 {dimension_numbers = #tpu.dot_dimension_numbers<[1], [0], [0], [1], [0, 0, 1, 1], [], []>} : vector<8x32xf32>, vector<32x16xf32>, vector<8x16xf32> -> vector<8x16xf32>
    %c0_51 = arith.constant 0 : index
    %c0_52 = arith.constant 0 : index
    %58 = vector.load %arg12[%c0_51, %c0_52] : memref<1x16xf32, #tpu.memory_space<vmem>>, vector<1x16xf32>
    %59 = vector.broadcast %58 : vector<1x16xf32> to vector<8x16xf32>
    %60 = arith.addf %57, %59 : vector<8x16xf32>
    %cst_53 = arith.constant 0.000000e+00 : f32
    %61 = vector.broadcast %cst_53 : f32 to vector<8x16xf32>
    %62 = arith.maximumf %60, %61 : vector<8x16xf32>
    %c0_54 = arith.constant 0 : index
    %c0_55 = arith.constant 0 : index
    %63 = vector.load %arg13[%c0_54, %c0_55] : memref<16x128xf32, #tpu.memory_space<vmem>>, vector<16x128xf32>
    %cst_56 = arith.constant dense<0.000000e+00> : vector<8x128xf32>
    %64 = tpu.matmul %62, %63, %cst_56 {dimension_numbers = #tpu.dot_dimension_numbers<[1], [0], [0], [1], [0, 0, 1, 1], [], []>} : vector<8x16xf32>, vector<16x128xf32>, vector<8x128xf32> -> vector<8x128xf32>
    %c0_57 = arith.constant 0 : index
    %c0_58 = arith.constant 0 : index
    %65 = vector.load %arg14[%c0_57, %c0_58] : memref<1x128xf32, #tpu.memory_space<vmem>>, vector<1x128xf32>
    %66 = vector.broadcast %65 : vector<1x128xf32> to vector<8x128xf32>
    %67 = arith.addf %64, %66 : vector<8x128xf32>
    %cst_59 = arith.constant dense<0xFF800000> : vector<8xf32>
    %68 = vector.multi_reduction <maximumf>, %67, %cst_59 [1] : vector<8x128xf32> to vector<8xf32>
    %69 = vector.shape_cast %68 : vector<8xf32> to vector<8x1xf32>
    %70 = vector.broadcast %69 : vector<8x1xf32> to vector<8x128xf32>
    %71 = arith.subf %67, %70 : vector<8x128xf32>
    %72 = math.exp %71 : vector<8x128xf32>
    %cst_60 = arith.constant dense<0.000000e+00> : vector<8xf32>
    %73 = vector.multi_reduction <add>, %72, %cst_60 [1] : vector<8x128xf32> to vector<8xf32>
    %74 = vector.shape_cast %73 : vector<8xf32> to vector<8x1xf32>
    %75 = vector.broadcast %74 : vector<8x1xf32> to vector<8x128xf32>
    %76 = arith.divf %72, %75 : vector<8x128xf32>
    %c0_61 = arith.constant 0 : index
    %c0_62 = arith.constant 0 : index
    %77 = vector.load %arg15[%c0_61, %c0_62] : memref<8x128xf32, #tpu.memory_space<vmem>>, vector<8x128xf32>
    tpu.vector_store %arg15[%c0_61, %c0_62], %76 {strides = array<i32>} : memref<8x128xf32, #tpu.memory_space<vmem>>, vector<8x128xf32>,
    return
  }
}

</mosaic_0001>

<llo_original>
// kernel: tpu_custom_call.1
$region0: #{tpu_custom_call.1}
  #allocation0 [shape = 'u32[]', space=smem, size = 0x4, offset = 0x4, fixed_abs, tag = 'smem constant byte address 0x4 - core index']
  #allocation1 [shape = 'u32[72,128]{1,0:T(1,128)}', space=vmem, size = 0x9000, scoped, tag = 'internal scratch']
  %s0 = inlined_call_operand.vmem [shape: f32[16,4], index: 0, kind: input, shape index: {}]
  %s1 = inlined_call_operand.vmem [shape: f32[48,16], index: 1, kind: input, shape index: {}]
  %s2 = inlined_call_operand.hbm [shape: f32[8,16], index: 2, kind: input, shape index: {}]
  %s3 = inlined_call_operand.vmem [shape: f32[4,8], index: 3, kind: input, shape index: {}]
  %s4 = inlined_call_operand.vmem [shape: f32[1,8], index: 4, kind: input, shape index: {}]
  %s5 = inlined_call_operand.vmem [shape: f32[3,8,16], index: 5, kind: input, shape index: {}]
  %s6 = inlined_call_operand.hbm [shape: f32[8,16], index: 6, kind: input, shape index: {}]
  %s7 = inlined_call_operand.vmem [shape: f32[1,16], index: 7, kind: input, shape index: {}]
  %s8 = inlined_call_operand.vmem [shape: f32[3,16,32], index: 8, kind: input, shape index: {}]
  %s9 = inlined_call_operand.vmem [shape: f32[16,32], index: 9, kind: input, shape index: {}]
  %s10 = inlined_call_operand.hbm [shape: f32[1,32], index: 10, kind: input, shape index: {}]
  %s11 = inlined_call_operand.vmem [shape: f32[32,16], index: 11, kind: input, shape index: {}]
  %s12 = inlined_call_operand.vmem [shape: f32[1,16], index: 12, kind: input, shape index: {}]
  %s13 = inlined_call_operand.vmem [shape: f32[16,128], index: 13, kind: input, shape index: {}]
  %s14 = inlined_call_operand.vmem [shape: f32[1,128], index: 14, kind: input, shape index: {}]
  %s15 = inlined_call_operand.hbm [shape: f32[8,128], index: 15, kind: output, shape index: {}]
  %s16 = sld [smem:[#allocation0]]
  $region82: #{tpu_custom_call.1} parent=0
    _
  %s18 = ssub.s32 1, %s16
  %s19 = scalar_select 0, %s18, %s16
  $region1: #{tpu_custom_call.1} parent=0
    #allocation2 [shape = 'u8[4096]{0}', space=vmem, size = 0x1000, scoped, tag = 'input window, operand 2, single buffered']
    #allocation3 [shape = 's32[1]{0}', space=sflag, size = 0x4, scoped, tag = 'scoped memory for tpu_custom_call.1']
    #allocation4 [shape = 's32[1]{0}', space=sflag, size = 0x4, scoped, tag = 'scoped memory for tpu_custom_call.1']
    #allocation5 [shape = 'u8[4096]{0}', space=vmem, size = 0x1000, scoped, tag = 'input window, operand 6, single buffered']
    #allocation6 [shape = 's32[1]{0}', space=sflag, size = 0x4, scoped, tag = 'scoped memory for tpu_custom_call.1']
    #allocation7 [shape = 'u8[512]{0}', space=vmem, size = 0x400, scoped, tag = 'input window, operand 10, single buffered']
    #allocation8 [shape = 'u8[4096]{0}', space=vmem, size = 0x1000, scoped, tag = 'output window, operand 0, single buffered']
    %20 = vsyncpa [#allocation3], 0
    %21 = vsyncpa [#allocation6], 0
    %22 = vsyncpa [#allocation4], 0
    // Predicated region
    $region2: #{tpu_custom_call.1} parent=1 // pred_check
      _
    $region3: #{tpu_custom_call.1} parent=1 // pred_check_branch
      %24 = sbr.rel (0) target = $region5
    $region4: #{tpu_custom_call.1} parent=1 // pred_region
      _
    $region5: #{tpu_custom_call.1} parent=1 // pred_fallthru
      _
    // Predicated region
    $region6: #{tpu_custom_call.1} parent=1 // pred_check
      _
    $region7: #{tpu_custom_call.1} parent=1 // pred_check_branch
      %26 = sbr.rel (0) target = $region9
    $region8: #{tpu_custom_call.1} parent=1 // pred_region
      _
    $region9: #{tpu_custom_call.1} parent=1 // pred_fallthru
      _
    // Predicated region
    $region10: #{tpu_custom_call.1} parent=1 // pred_check
      _
    $region11: #{tpu_custom_call.1} parent=1 // pred_check_branch
      %28 = sbr.rel (0) target = $region13
    $region12: #{tpu_custom_call.1} parent=1 // pred_region
      %30 = vsyncadd [#allocation3], 0
      %s32 = sshll.u32 %s2, 4
      %s33 = int_to_ptr.hbm [resolvable:$true] %s32
      %s34 = sshll.u32 [#allocation2], 4
      %s35 = int_to_ptr.vmem [resolvable:$true] %s34
      %37 = dma.hbm_to_vmem [thread:$0]  %s33, 128, %s35, [#allocation3]
    $region13: #{tpu_custom_call.1} parent=1 // pred_fallthru
      _
    // Predicated region
    $region14: #{tpu_custom_call.1} parent=1 // pred_check
      _
    $region15: #{tpu_custom_call.1} parent=1 // pred_check_branch
      %39 = sbr.rel (0) target = $region17
    $region16: #{tpu_custom_call.1} parent=1 // pred_region
      _
    $region17: #{tpu_custom_call.1} parent=1 // pred_fallthru
      _
    // Predicated region
    $region18: #{tpu_custom_call.1} parent=1 // pred_check
      _
    $region19: #{tpu_custom_call.1} parent=1 // pred_check_branch
      %41 = sbr.rel (0) target = $region21
    $region20: #{tpu_custom_call.1} parent=1 // pred_region
      _
    $region21: #{tpu_custom_call.1} parent=1 // pred_fallthru
      _
    // Predicated region
    $region22: #{tpu_custom_call.1} parent=1 // pred_check
      _
    $region23: #{tpu_custom_call.1} parent=1 // pred_check_branch
      %43 = sbr.rel (0) target = $region25
    $region24: #{tpu_custom_call.1} parent=1 // pred_region
      _
    $region25: #{tpu_custom_call.1} parent=1 // pred_fallthru
      _
    // Predicated region
    $region26: #{tpu_custom_call.1} parent=1 // pred_check
      _
    $region27: #{tpu_custom_call.1} parent=1 // pred_check_branch
      %45 = sbr.rel (0) target = $region29
    $region28: #{tpu_custom_call.1} parent=1 // pred_region
      %47 = vsyncadd [#allocation6], 0
      %s49 = sshll.u32 %s6, 4
      %s50 = int_to_ptr.hbm [resolvable:$true] %s49
      %s51 = sshll.u32 [#allocation5], 4
      %s52 = int_to_ptr.vmem [resolvable:$true] %s51
      %54 = dma.hbm_to_vmem [thread:$0]  %s50, 128, %s52, [#allocation6]
    $region29: #{tpu_custom_call.1} parent=1 // pred_fallthru
      _
    // Predicated region
    $region30: #{tpu_custom_call.1} parent=1 // pred_check
      _
    $region31: #{tpu_custom_call.1} parent=1 // pred_check_branch
      %56 = sbr.rel (0) target = $region33
    $region32: #{tpu_custom_call.1} parent=1 // pred_region
      _
    $region33: #{tpu_custom_call.1} parent=1 // pred_fallthru
      _
    // Predicated region
    $region34: #{tpu_custom_call.1} parent=1 // pred_check
      _
    $region35: #{tpu_custom_call.1} parent=1 // pred_check_branch
      %58 = sbr.rel (0) target = $region37
    $region36: #{tpu_custom_call.1} parent=1 // pred_region
      _
    $region37: #{tpu_custom_call.1} parent=1 // pred_fallthru
      _
    // Predicated region
    $region38: #{tpu_custom_call.1} parent=1 // pred_check
      _
    $region39: #{tpu_custom_call.1} parent=1 // pred_check_branch
      %60 = sbr.rel (0) target = $region41
    $region40: #{tpu_custom_call.1} parent=1 // pred_region
      _
    $region41: #{tpu_custom_call.1} parent=1 // pred_fallthru
      _
    // Predicated region
    $region42: #{tpu_custom_call.1} parent=1 // pred_check
      _
    $region43: #{tpu_custom_call.1} parent=1 // pred_check_branch
      %62 = sbr.rel (0) target = $region45
    $region44: #{tpu_custom_call.1} parent=1 // pred_region
      %64 = vsyncadd [#allocation6], 0
      %s66 = sshll.u32 %s10, 4
      %s67 = int_to_ptr.hbm [resolvable:$true] %s66
      %s68 = sshll.u32 [#allocation7], 4
      %s69 = int_to_ptr.vmem [resolvable:$true] %s68
      %71 = dma.hbm_to_vmem [thread:$0]  %s67, 16, %s69, [#allocation6]
    $region45: #{tpu_custom_call.1} parent=1 // pred_fallthru
      _
    // Predicated region
    $region46: #{tpu_custom_call.1} parent=1 // pred_check
      _
    $region47: #{tpu_custom_call.1} parent=1 // pred_check_branch
      %73 = sbr.rel (0) target = $region49
    $region48: #{tpu_custom_call.1} parent=1 // pred_region
      _
    $region49: #{tpu_custom_call.1} parent=1 // pred_fallthru
      _
    // Predicated region
    $region50: #{tpu_custom_call.1} parent=1 // pred_check
      _
    $region51: #{tpu_custom_call.1} parent=1 // pred_check_branch
      %75 = sbr.rel (0) target = $region53
    $region52: #{tpu_custom_call.1} parent=1 // pred_region
      _
    $region53: #{tpu_custom_call.1} parent=1 // pred_fallthru
      _
    // Predicated region
    $region54: #{tpu_custom_call.1} parent=1 // pred_check
      _
    $region55: #{tpu_custom_call.1} parent=1 // pred_check_branch
      %77 = sbr.rel (0) target = $region57
    $region56: #{tpu_custom_call.1} parent=1 // pred_region
      _
    $region57: #{tpu_custom_call.1} parent=1 // pred_fallthru
      _
    // Predicated region
    $region58: #{tpu_custom_call.1} parent=1 // pred_check
      _
    $region59: #{tpu_custom_call.1} parent=1 // pred_check_branch
      %79 = sbr.rel (0) target = $region61
    $region60: #{tpu_custom_call.1} parent=1 // pred_region
      _
    $region61: #{tpu_custom_call.1} parent=1 // pred_fallthru
      _
    // Predicated region
    $region62: #{tpu_custom_call.1} parent=1 // pred_check
      _
    $region63: #{tpu_custom_call.1} parent=1 // pred_check_branch
      %81 = sbr.rel (0) target = $region65
    $region64: #{tpu_custom_call.1} parent=1 // pred_region
      %83 = dma.done [#allocation3], 128
    $region65: #{tpu_custom_call.1} parent=1 // pred_fallthru
      _
    // Predicated region
    $region66: #{tpu_custom_call.1} parent=1 // pred_check
      _
    $region67: #{tpu_custom_call.1} parent=1 // pred_check_branch
      %85 = sbr.rel (0) target = $region69
    $region68: #{tpu_custom_call.1} parent=1 // pred_region
      %87 = dma.done [#allocation6], 128
    $region69: #{tpu_custom_call.1} parent=1 // pred_fallthru
      _
    // Predicated region
    $region70: #{tpu_custom_call.1} parent=1 // pred_check
      _
    $region71: #{tpu_custom_call.1} parent=1 // pred_check_branch
      %89 = sbr.rel (0) target = $region73
    $region72: #{tpu_custom_call.1} parent=1 // pred_region
      %91 = dma.done [#allocation6], 16
    $region73: #{tpu_custom_call.1} parent=1 // pred_fallthru
      _
    %v92 = vld [vmem:[%s0] sm:$0xff]
    %v93 = vld [vmem:[%s0 + $0x8] sm:$0xff]
    %v94 = vld [vmem:[%s3] sm:$0xf]
    %v95 = vld [vmem:[%s4] sm:$0x1]
    %v97 = vperm.slane %v95, 0
    %vm99 = vcmask 31744
    %v101 = vsel %vm99, %v92, 0
    %v104 = vsel %vm99, %v93, 0
    %vm106 = vcmask 1043456
    %v108 = vsel %vm106, %v94, 0
    %110 = vmatpush.msra.mxu0 0.0
    %111 = vmatpush.msra.mxu0 0.0
    %112 = vmatpush.msra.mxu0 0.0
    %113 = vmatpush.msra.mxu0 0.0
    %114 = vmatpush.msra.mxu0 0.0
    %115 = vmatpush.msra.mxu0 0.0
    %116 = vmatpush.msra.mxu0 0.0
    %117 = vmatpush.msra.mxu0 0.0
    %118 = vmatpush.msra.mxu0 0.0
    %119 = vmatpush.msra.mxu0 0.0
    %120 = vmatpush.msra.mxu0 0.0
    %121 = vmatpush.msra.mxu0 0.0
    %122 = vmatpush.msra.mxu0 0.0
    %123 = vmatpush.msra.mxu0 0.0
    %124 = vmatpush.msra.mxu0 0.0
    %125 = vmatpush.msra.mxu0 %v108
    %126 = vmatmul.f32.gmra.mxu0 %v101
    %v127 = vpop.f32.mrf.mxu0
    %v128 = vadd.f32 %v97, %v127
    %129 = vmatmul.f32.gmra.mxu0 %v104
    %v130 = vpop.f32.mrf.mxu0
    %v131 = vadd.f32 %v97, %v130
    %132 = vdwg.mxu0
    %v133 = vld [vmem:[%s1] sm:$0xff]
    %v134 = vld [vmem:[%s1 + $0x8] sm:$0xff]
    %v135 = vld [vmem:[%s1 + $0x10] sm:$0xff]
    %v136 = vld [vmem:[%s1 + $0x18] sm:$0xff]
    %v137 = vld [vmem:[%s1 + $0x20] sm:$0xff]
    %v138 = vld [vmem:[%s1 + $0x28] sm:$0xff]
    %vm139 = vcmask 130048
    %v141 = vsel %vm139, %v133, 0
    %v144 = vsel %vm139, %v134, 0
    %v147 = vsel %vm139, %v135, 0
    %v150 = vsel %vm139, %v136, 0
    %v153 = vsel %vm139, %v137, 0
    %v156 = vsel %vm139, %v138, 0
    %158 = vmatpush.msra.mxu0 0.0
    %159 = vmatpush.msra.mxu0 0.0
    %160 = vmatpush.msra.mxu0 0.0
    %161 = vmatpush.msra.mxu0 0.0
    %162 = vmatpush.msra.mxu0 0.0
    %163 = vmatpush.msra.mxu0 0.0
    %164 = vmatpush.msra.mxu0 0.0
    %165 = vmatpush.msra.mxu0 0.0
    %166 = vmatpush.msra.mxu0 0.0
    %167 = vmatpush.msra.mxu0 0.0
    %168 = vmatpush.msra.mxu0 0.0
    %169 = vmatpush.msra.mxu0 0.0
    %170 = vmatpush.msra.mxu0 0.0
    %171 = vmatpush.msra.mxu0 0.0
    %172 = vmatpush.msra.mxu0 %v131
    %173 = vmatpush.msra.mxu0 %v128
    %174 = vmatmul.f32.gmra.mxu0 %v141
    %v175 = vpop.f32.mrf.mxu0
    %v176 = vadd.f32 0.0, %v175
    %177 = vmatmul.f32.gmra.mxu0 %v144
    %v178 = vpop.f32.mrf.mxu0
    %v179 = vadd.f32 0.0, %v178
    %180 = vmatmul.f32.gmra.mxu0 %v147
    %v181 = vpop.f32.mrf.mxu0
    %v182 = vadd.f32 0.0, %v181
    %183 = vmatmul.f32.gmra.mxu0 %v150
    %v184 = vpop.f32.mrf.mxu0
    %v185 = vadd.f32 0.0, %v184
    %186 = vmatmul.f32.gmra.mxu0 %v153
    %v187 = vpop.f32.mrf.mxu0
    %v188 = vadd.f32 0.0, %v187
    %189 = vmatmul.f32.gmra.mxu0 %v156
    %v190 = vpop.f32.mrf.mxu0
    %v191 = vadd.f32 0.0, %v190
    %192 = vdwg.mxu0
    %v193 = vld [vmem:[#allocation5] sm:$0xff]
    %v194 = vld [vmem:[%s7] sm:$0x1]
    %v196 = vperm.slane %v194, 0
    %vm198 = vcmask 64512
    %v200 = vsel %vm198, %v128, 0
    %v203 = vsel %vm198, %v131, 0
    %205 = vmatpush.msra.mxu0 0.0
    %206 = vmatpush.msra.mxu0 0.0
    %207 = vmatpush.msra.mxu0 0.0
    %208 = vmatpush.msra.mxu0 0.0
    %209 = vmatpush.msra.mxu0 0.0
    %210 = vmatpush.msra.mxu0 0.0
    %211 = vmatpush.msra.mxu0 0.0
    %212 = vmatpush.msra.mxu0 0.0
    %213 = vmatpush.msra.mxu0 0.0
    %214 = vmatpush.msra.mxu0 0.0
    %215 = vmatpush.msra.mxu0 0.0
    %216 = vmatpush.msra.mxu0 0.0
    %217 = vmatpush.msra.mxu0 0.0
    %218 = vmatpush.msra.mxu0 0.0
    %219 = vmatpush.msra.mxu0 0.0
    %220 = vmatpush.msra.mxu0 %v193
    %221 = vmatmul.f32.gmra.mxu0 %v200
    %v222 = vpop.f32.mrf.mxu0
    %v223 = vadd.f32 %v196, %v222
    %224 = vmatmul.f32.gmra.mxu0 %v203
    %v225 = vpop.f32.mrf.mxu0
    %v226 = vadd.f32 %v196, %v225
    %227 = vdwg.mxu0
    %v228 = vld [vmem:[%s5] sm:$0xff]
    %v230 = vsel %vm198, %v176, 0
    %v233 = vsel %vm198, %v179, 0
    %235 = vmatpush.msra.mxu0 0.0
    %236 = vmatpush.msra.mxu0 0.0
    %237 = vmatpush.msra.mxu0 0.0
    %238 = vmatpush.msra.mxu0 0.0
    %239 = vmatpush.msra.mxu0 0.0
    %240 = vmatpush.msra.mxu0 0.0
    %241 = vmatpush.msra.mxu0 0.0
    %242 = vmatpush.msra.mxu0 0.0
    %243 = vmatpush.msra.mxu0 0.0
    %244 = vmatpush.msra.mxu0 0.0
    %245 = vmatpush.msra.mxu0 0.0
    %246 = vmatpush.msra.mxu0 0.0
    %247 = vmatpush.msra.mxu0 0.0
    %248 = vmatpush.msra.mxu0 0.0
    %249 = vmatpush.msra.mxu0 0.0
    %250 = vmatpush.msra.mxu0 %v228
    %251 = vmatmul.f32.gmra.mxu0 %v230
    %v252 = vpop.f32.mrf.mxu0
    %v253 = vadd.f32 0.0, %v252
    %254 = vmatmul.f32.gmra.mxu0 %v233
    %v255 = vpop.f32.mrf.mxu0
    %v256 = vadd.f32 0.0, %v255
    %257 = vdwg.mxu0
    %v258 = vadd.f32 %v223, %v253
    %v259 = vadd.f32 %v226, %v256
    %s260 = scalar_lea.vmem %s5, 8
    %v261 = vld [vmem:[%s260] sm:$0xff]
    %v263 = vsel %vm198, %v182, 0
    %v266 = vsel %vm198, %v185, 0
    %268 = vmatpush.msra.mxu0 0.0
    %269 = vmatpush.msra.mxu0 0.0
    %270 = vmatpush.msra.mxu0 0.0
    %271 = vmatpush.msra.mxu0 0.0
    %272 = vmatpush.msra.mxu0 0.0
    %273 = vmatpush.msra.mxu0 0.0
    %274 = vmatpush.msra.mxu0 0.0
    %275 = vmatpush.msra.mxu0 0.0
    %276 = vmatpush.msra.mxu0 0.0
    %277 = vmatpush.msra.mxu0 0.0
    %278 = vmatpush.msra.mxu0 0.0
    %279 = vmatpush.msra.mxu0 0.0
    %280 = vmatpush.msra.mxu0 0.0
    %281 = vmatpush.msra.mxu0 0.0
    %282 = vmatpush.msra.mxu0 0.0
    %283 = vmatpush.msra.mxu0 %v261
    %284 = vmatmul.f32.gmra.mxu0 %v263
    %v285 = vpop.f32.mrf.mxu0
    %v286 = vadd.f32 0.0, %v285
    %287 = vmatmul.f32.gmra.mxu0 %v266
    %v288 = vpop.f32.mrf.mxu0
    %v289 = vadd.f32 0.0, %v288
    %290 = vdwg.mxu0
    %v291 = vadd.f32 %v258, %v286
    %v292 = vadd.f32 %v259, %v289
    %s293 = scalar_lea.vmem %s5, 16
    %v294 = vld [vmem:[%s293] sm:$0xff]
    %v296 = vsel %vm198, %v188, 0
    %v299 = vsel %vm198, %v191, 0
    %301 = vmatpush.msra.mxu0 0.0
    %302 = vmatpush.msra.mxu0 0.0
    %303 = vmatpush.msra.mxu0 0.0
    %304 = vmatpush.msra.mxu0 0.0
    %305 = vmatpush.msra.mxu0 0.0
    %306 = vmatpush.msra.mxu0 0.0
    %307 = vmatpush.msra.mxu0 0.0
    %308 = vmatpush.msra.mxu0 0.0
    %309 = vmatpush.msra.mxu0 0.0
    %310 = vmatpush.msra.mxu0 0.0
    %311 = vmatpush.msra.mxu0 0.0
    %312 = vmatpush.msra.mxu0 0.0
    %313 = vmatpush.msra.mxu0 0.0
    %314 = vmatpush.msra.mxu0 0.0
    %315 = vmatpush.msra.mxu0 0.0
    %316 = vmatpush.msra.mxu0 %v294
    %317 = vmatmul.f32.gmra.mxu0 %v296
    %v318 = vpop.f32.mrf.mxu0
    %v319 = vadd.f32 0.0, %v318
    %320 = vmatmul.f32.gmra.mxu0 %v299
    %v321 = vpop.f32.mrf.mxu0
    %v322 = vadd.f32 0.0, %v321
    %323 = vdwg.mxu0
    %v324 = vadd.f32 %v291, %v319
    %v325 = vadd.f32 %v292, %v322
    %v326 = vmax.f32 %v324, 0.0
    %v327 = vmax.f32 %v325, 0.0
    %328 = vmatpush.msra.mxu0 0.0
    %329 = vmatpush.msra.mxu0 0.0
    %330 = vmatpush.msra.mxu0 0.0
    %331 = vmatpush.msra.mxu0 0.0
    %332 = vmatpush.msra.mxu0 0.0
    %333 = vmatpush.msra.mxu0 0.0
    %334 = vmatpush.msra.mxu0 0.0
    %335 = vmatpush.msra.mxu0 0.0
    %336 = vmatpush.msra.mxu0 0.0
    %337 = vmatpush.msra.mxu0 0.0
    %338 = vmatpush.msra.mxu0 0.0
    %339 = vmatpush.msra.mxu0 0.0
    %340 = vmatpush.msra.mxu0 0.0
    %341 = vmatpush.msra.mxu0 0.0
    %342 = vmatpush.msra.mxu0 %v327
    %343 = vmatpush.msra.mxu0 %v326
    %344 = vmatmul.f32.gmra.mxu0 %v141
    %v345 = vpop.f32.mrf.mxu0
    %v346 = vadd.f32 0.0, %v345
    %347 = vmatmul.f32.gmra.mxu0 %v144
    %v348 = vpop.f32.mrf.mxu0
    %v349 = vadd.f32 0.0, %v348
    %350 = vmatmul.f32.gmra.mxu0 %v147
    %v351 = vpop.f32.mrf.mxu0
    %v352 = vadd.f32 0.0, %v351
    %353 = vmatmul.f32.gmra.mxu0 %v150
    %v354 = vpop.f32.mrf.mxu0
    %v355 = vadd.f32 0.0, %v354
    %356 = vmatmul.f32.gmra.mxu0 %v153
    %v357 = vpop.f32.mrf.mxu0
    %v358 = vadd.f32 0.0, %v357
    %359 = vmatmul.f32.gmra.mxu0 %v156
    %v360 = vpop.f32.mrf.mxu0
    %v361 = vadd.f32 0.0, %v360
    %362 = vdwg.mxu0
    %v363 = vld [vmem:[%s9] sm:$0xff]
    %v364 = vld [vmem:[%s9 + $0x8] sm:$0xff]
    %v365 = vld [vmem:[#allocation7] sm:$0x1]
    %v367 = vperm.slane %v365, 0
    %v370 = vsel %vm139, %v326, 0
    %v373 = vsel %vm139, %v327, 0
    %375 = vmatpush.msra.mxu0 0.0
    %376 = vmatpush.msra.mxu0 0.0
    %377 = vmatpush.msra.mxu0 0.0
    %378 = vmatpush.msra.mxu0 0.0
    %379 = vmatpush.msra.mxu0 0.0
    %380 = vmatpush.msra.mxu0 0.0
    %381 = vmatpush.msra.mxu0 0.0
    %382 = vmatpush.msra.mxu0 0.0
    %383 = vmatpush.msra.mxu0 0.0
    %384 = vmatpush.msra.mxu0 0.0
    %385 = vmatpush.msra.mxu0 0.0
    %386 = vmatpush.msra.mxu0 0.0
    %387 = vmatpush.msra.mxu0 0.0
    %388 = vmatpush.msra.mxu0 0.0
    %389 = vmatpush.msra.mxu0 %v364
    %390 = vmatpush.msra.mxu0 %v363
    %391 = vmatmul.f32.gmra.mxu0 %v370
    %v392 = vpop.f32.mrf.mxu0
    %v393 = vadd.f32 %v367, %v392
    %394 = vmatmul.f32.gmra.mxu0 %v373
    %v395 = vpop.f32.mrf.mxu0
    %v396 = vadd.f32 %v367, %v395
    %397 = vdwg.mxu0
    %v398 = vld [vmem:[%s8] sm:$0xff]
    %v399 = vld [vmem:[%s8 + $0x8] sm:$0xff]
    %v401 = vsel %vm139, %v346, 0
    %v404 = vsel %vm139, %v349, 0
    %406 = vmatpush.msra.mxu0 0.0
    %407 = vmatpush.msra.mxu0 0.0
    %408 = vmatpush.msra.mxu0 0.0
    %409 = vmatpush.msra.mxu0 0.0
    %410 = vmatpush.msra.mxu0 0.0
    %411 = vmatpush.msra.mxu0 0.0
    %412 = vmatpush.msra.mxu0 0.0
    %413 = vmatpush.msra.mxu0 0.0
    %414 = vmatpush.msra.mxu0 0.0
    %415 = vmatpush.msra.mxu0 0.0
    %416 = vmatpush.msra.mxu0 0.0
    %417 = vmatpush.msra.mxu0 0.0
    %418 = vmatpush.msra.mxu0 0.0
    %419 = vmatpush.msra.mxu0 0.0
    %420 = vmatpush.msra.mxu0 %v399
    %421 = vmatpush.msra.mxu0 %v398
    %422 = vmatmul.f32.gmra.mxu0 %v401
    %v423 = vpop.f32.mrf.mxu0
    %v424 = vadd.f32 0.0, %v423
    %425 = vmatmul.f32.gmra.mxu0 %v404
    %v426 = vpop.f32.mrf.mxu0
    %v427 = vadd.f32 0.0, %v426
    %428 = vdwg.mxu0
    %v429 = vadd.f32 %v393, %v424
    %v430 = vadd.f32 %v396, %v427
    %s431 = scalar_lea.vmem %s8, 16
    %v432 = vld [vmem:[%s431] sm:$0xff]
    %v433 = vld [vmem:[%s431 + $0x8] sm:$0xff]
    %v435 = vsel %vm139, %v352, 0
    %v438 = vsel %vm139, %v355, 0
    %440 = vmatpush.msra.mxu0 0.0
    %441 = vmatpush.msra.mxu0 0.0
    %442 = vmatpush.msra.mxu0 0.0
    %443 = vmatpush.msra.mxu0 0.0
    %444 = vmatpush.msra.mxu0 0.0
    %445 = vmatpush.msra.mxu0 0.0
    %446 = vmatpush.msra.mxu0 0.0
    %447 = vmatpush.msra.mxu0 0.0
    %448 = vmatpush.msra.mxu0 0.0
    %449 = vmatpush.msra.mxu0 0.0
    %450 = vmatpush.msra.mxu0 0.0
    %451 = vmatpush.msra.mxu0 0.0
    %452 = vmatpush.msra.mxu0 0.0
    %453 = vmatpush.msra.mxu0 0.0
    %454 = vmatpush.msra.mxu0 %v433
    %455 = vmatpush.msra.mxu0 %v432
    %456 = vmatmul.f32.gmra.mxu0 %v435
    %v457 = vpop.f32.mrf.mxu0
    %v458 = vadd.f32 0.0, %v457
    %459 = vmatmul.f32.gmra.mxu0 %v438
    %v460 = vpop.f32.mrf.mxu0
    %v461 = vadd.f32 0.0, %v460
    %462 = vdwg.mxu0
    %v463 = vadd.f32 %v429, %v458
    %v464 = vadd.f32 %v430, %v461
    %s465 = scalar_lea.vmem %s8, 32
    %v466 = vld [vmem:[%s465] sm:$0xff]
    %v467 = vld [vmem:[%s465 + $0x8] sm:$0xff]
    %v469 = vsel %vm139, %v358, 0
    %v472 = vsel %vm139, %v361, 0
    %474 = vmatpush.msra.mxu0 0.0
    %475 = vmatpush.msra.mxu0 0.0
    %476 = vmatpush.msra.mxu0 0.0
    %477 = vmatpush.msra.mxu0 0.0
    %478 = vmatpush.msra.mxu0 0.0
    %479 = vmatpush.msra.mxu0 0.0
    %480 = vmatpush.msra.mxu0 0.0
    %481 = vmatpush.msra.mxu0 0.0
    %482 = vmatpush.msra.mxu0 0.0
    %483 = vmatpush.msra.mxu0 0.0
    %484 = vmatpush.msra.mxu0 0.0
    %485 = vmatpush.msra.mxu0 0.0
    %486 = vmatpush.msra.mxu0 0.0
    %487 = vmatpush.msra.mxu0 0.0
    %488 = vmatpush.msra.mxu0 %v467
    %489 = vmatpush.msra.mxu0 %v466
    %490 = vmatmul.f32.gmra.mxu0 %v469
    %v491 = vpop.f32.mrf.mxu0
    %v492 = vadd.f32 0.0, %v491
    %493 = vmatmul.f32.gmra.mxu0 %v472
    %v494 = vpop.f32.mrf.mxu0
    %v495 = vadd.f32 0.0, %v494
    %496 = vdwg.mxu0
    %v497 = vadd.f32 %v463, %v492
    %v498 = vadd.f32 %v464, %v495
    %v499 = vmax.f32 %v497, 0.0
    %v500 = vmax.f32 %v498, 0.0
    %v501 = vld [vmem:[#allocation2] sm:$0xff]
    %v503 = vsel %vm139, %v501, 0
    %505 = vmatpush.msra.mxu0 0.0
    %506 = vmatpush.msra.mxu0 0.0
    %507 = vmatpush.msra.mxu0 0.0
    %508 = vmatpush.msra.mxu0 0.0
    %509 = vmatpush.msra.mxu0 0.0
    %510 = vmatpush.msra.mxu0 0.0
    %511 = vmatpush.msra.mxu0 0.0
    %512 = vmatpush.msra.mxu0 0.0
    %513 = vmatpush.msra.mxu0 0.0
    %514 = vmatpush.msra.mxu0 0.0
    %515 = vmatpush.msra.mxu0 0.0
    %516 = vmatpush.msra.mxu0 0.0
    %517 = vmatpush.msra.mxu0 0.0
    %518 = vmatpush.msra.mxu0 0.0
    %519 = vmatpush.msra.mxu0 %v500
    %520 = vmatpush.msra.mxu0 %v499
    %521 = vmatmul.f32.gmra.mxu0 %v503
    %v522 = vpop.f32.mrf.mxu0
    %v523 = vadd.f32 0.0, %v522
    %524 = vdwg.mxu0
    %v525 = vld [vmem:[%s11] sm:$0xff]
    %v526 = vld [vmem:[%s11 + $0x8] sm:$0xff]
    %v527 = vld [vmem:[%s11 + $0x10] sm:$0xff]
    %v528 = vld [vmem:[%s11 + $0x18] sm:$0xff]
    %v529 = vld [vmem:[%s12] sm:$0x1]
    %v531 = vperm.slane %v529, 0
    %vm533 = vcmask 261120
    %v535 = vsel %vm533, %v523, 0
    %537 = vmatpush.msra.mxu0 0.0
    %538 = vmatpush.msra.mxu0 0.0
    %539 = vmatpush.msra.mxu0 0.0
    %540 = vmatpush.msra.mxu0 0.0
    %541 = vmatpush.msra.mxu0 0.0
    %542 = vmatpush.msra.mxu0 0.0
    %543 = vmatpush.msra.mxu0 0.0
    %544 = vmatpush.msra.mxu0 0.0
    %545 = vmatpush.msra.mxu0 0.0
    %546 = vmatpush.msra.mxu0 0.0
    %547 = vmatpush.msra.mxu0 0.0
    %548 = vmatpush.msra.mxu0 0.0
    %549 = vmatpush.msra.mxu0 %v528
    %550 = vmatpush.msra.mxu0 %v527
    %551 = vmatpush.msra.mxu0 %v526
    %552 = vmatpush.msra.mxu0 %v525
    %553 = vmatmul.f32.gmra.mxu0 %v535
    %v554 = vpop.f32.mrf.mxu0
    %v555 = vadd.f32 %v531, %v554
    %556 = vdwg.mxu0
    %v557 = vmax.f32 %v555, 0.0
    %v558 = vld [vmem:[%s13] sm:$0xff]
    %v559 = vld [vmem:[%s13 + $0x8] sm:$0xff]
    %v560 = vld [vmem:[%s14] sm:$0x1]
    %v562 = vperm.slane %v560, 0
    %v565 = vsel %vm139, %v557, 0
    %567 = vmatpush.msra.mxu0 0.0
    %568 = vmatpush.msra.mxu0 0.0
    %569 = vmatpush.msra.mxu0 0.0
    %570 = vmatpush.msra.mxu0 0.0
    %571 = vmatpush.msra.mxu0 0.0
    %572 = vmatpush.msra.mxu0 0.0
    %573 = vmatpush.msra.mxu0 0.0
    %574 = vmatpush.msra.mxu0 0.0
    %575 = vmatpush.msra.mxu0 0.0
    %576 = vmatpush.msra.mxu0 0.0
    %577 = vmatpush.msra.mxu0 0.0
    %578 = vmatpush.msra.mxu0 0.0
    %579 = vmatpush.msra.mxu0 0.0
    %580 = vmatpush.msra.mxu0 0.0
    %581 = vmatpush.msra.mxu0 %v559
    %582 = vmatpush.msra.mxu0 %v558
    %583 = vmatmul.f32.gmra.mxu0 %v565
    %v584 = vpop.f32.mrf.mxu0
    %v585 = vadd.f32 %v562, %v584
    %586 = vdwg.mxu0
    %587 = vmax.xlane.f32.xlu0 %v585
    %v588 = vpop.xlane.xlu0 %587
    %v589 = vsub.f32 %v585, %v588
    %v590 = vmul.f32 %v589, 1.442695
    %v591 = vpow.pop %v590
    %592 = vadd.xlane.f32.xlu0 %v591
    %v593 = vpop.xlane.xlu0 %592
    %v594 = vrcp.pop %v593
    %v595 = vmul.f32 %v593, %v594
    %v596 = vsub.f32 1.0, %v595
    %v597 = vmul.f32 %v594, %v596
    %v598 = vadd.f32 %v594, %v597
    %vm599 = vweird.f32 %v593
    %vm600 = vweird.f32 %v594
    %vm601 = vmor %vm599, %vm600
    %v602 = vsel %vm601, %v594, %v598
    %v603 = vand.u32 2147483647, %v593
    %vm604 = vcmp.eq.f32.partialorder %v603, 8.507059e+37
    %v605 = vand.u32 %v593, 2147483648
    %v606 = vor.u32 1.1754944e-38, %v605
    %v607 = vsel %vm604, %v606, %v602
    %v608 = vmul.f32 %v591, %v607
    %609 = vst [vmem:[#allocation8] sm:$0xff] %v608
    // Predicated region
    $region74: #{tpu_custom_call.1} parent=1 // pred_check
      _
    $region75: #{tpu_custom_call.1} parent=1 // pred_check_branch
      %611 = sbr.rel (0) target = $region77
    $region76: #{tpu_custom_call.1} parent=1 // pred_region
      %613 = vsyncadd [#allocation4], 0
      %s615 = sshll.u32 [#allocation8], 4
      %s616 = int_to_ptr.vmem [resolvable:$true] %s615
      %s617 = sshll.u32 %s15, 4
      %s618 = int_to_ptr.hbm [resolvable:$true] %s617
      %620 = dma.vmem_to_hbm [thread:$0]  %s616, 128, %s618, [#allocation4]
    $region77: #{tpu_custom_call.1} parent=1 // pred_fallthru
      _
    // Predicated region
    $region78: #{tpu_custom_call.1} parent=1 // pred_check
      _
    $region79: #{tpu_custom_call.1} parent=1 // pred_check_branch
      %622 = sbr.rel (0) target = $region81
    $region80: #{tpu_custom_call.1} parent=1 // pred_region
      %624 = dma.done [#allocation4], 128
    $region81: #{tpu_custom_call.1} parent=1 // pred_fallthru
      _
    %625 = vsyncpa [#allocation3], 1
    %626 = vsyncpa [#allocation6], 1
    %627 = vsyncpa [#allocation4], 1

</llo_original>
